<compile_context>
chip_gen: v5e
topology: v5e:2x2
jax: 0.10.0
libtpu: 0.0.40
codegen_flags: <defaults>
</compile_context>

<pallas_src>
import functools

import jax
import jax.numpy as jnp
import numpy as np
from jax.experimental import pallas as pl
from jax.experimental.pallas import tpu as pltpu


H_PAD = 128    # fused hidden width (n_nets * hidden, zero-padded) -> MXU-friendly K
OUT_PAD = 8    # output channels (rho, p, u) zero-padded to one full sublane group


def gpt_kernel(x_ref, w1_ref, b1_ref, w2_ref, b2_ref, w3_ref, b3_ref, out_ref):
    # Transposed layout: collocation points N on the lane (last) axis.
    x = x_ref[...]                                              # (d_in, TN)
    h1 = jnp.tanh(
        jnp.dot(w1_ref[...], x, preferred_element_type=jnp.float32) + b1_ref[...])
    h2 = jnp.tanh(
        jnp.dot(w2_ref[...], h1, preferred_element_type=jnp.float32) + b2_ref[...])
    out_ref[...] = (
        jnp.dot(w3_ref[...], h2, preferred_element_type=jnp.float32) + b3_ref[...])


def fuse_params(params):
    """One-time static fold of the GPT layers into three wide transposed matmuls.

    shift_i(x) = x @ W_shift_i^T + b_shift_i is folded into layer 1 of P_i;
    the frozen c_rho / c_p / c_u coefficients are folded into the output layer of
    P_i; the n_nets networks are concatenated along the hidden axis (W2 becomes
    block-diagonal) and zero-padded to H_PAD. All matrices are stored transposed
    so the kernel computes W @ X with N on the lane axis.
    """
    (w_shift, b_shift, w1, b1, w2, b2, w3, b3, c_rho, c_p, c_u) = params
    n_nets, d_in, hidden = w1.shape
    hf = n_nets * hidden
    assert hf <= H_PAD and 3 <= OUT_PAD

    # Fold the affine shift into the first layer of each P_i.
    w1_eff = jnp.einsum("nok,noh->nkh", w_shift, w1)            # (n, d_in, hidden)
    b1_eff = jnp.einsum("nxo,noh->nxh", b_shift, w1) + b1       # (n, 1, hidden)

    # Fold the frozen c coefficients into the output layer of each P_i.
    c_mat = jnp.stack([c_rho[0], c_p[0], c_u[0]], axis=-1)[:, None, :]  # (n, 1, 3)
    w3c = w3 * c_mat                                            # (n, hidden, 3)
    b3c = b3 * c_mat                                            # (n, 1, 3)

    # Concatenate the n_nets networks along the fused hidden axis (transposed).
    w1t = jnp.transpose(w1_eff, (0, 2, 1)).reshape(hf, d_in)    # (hf, d_in)
    b1t = b1_eff.reshape(hf, 1)                                 # (hf, 1)
    w1t = jnp.pad(w1t, ((0, H_PAD - hf), (0, 0)))
    b1t = jnp.pad(b1t, ((0, H_PAD - hf), (0, 0)))

    w2t = jnp.zeros((H_PAD, H_PAD), jnp.float32)
    for i in range(n_nets):                                     # block-diagonal W2^T
        w2t = w2t.at[i * hidden:(i + 1) * hidden,
                     i * hidden:(i + 1) * hidden].set(w2[i].T)
    b2t = jnp.zeros((H_PAD, 1), jnp.float32).at[:hf].set(
        jnp.transpose(b2, (0, 2, 1)).reshape(hf, 1))

    w3t = jnp.zeros((OUT_PAD, H_PAD), jnp.float32).at[:3, :hf].set(
        jnp.transpose(w3c, (2, 0, 1)).reshape(3, hf))           # (8, 128)
    b3t = jnp.zeros((OUT_PAD, 1), jnp.float32).at[:3].set(
        jnp.sum(b3c, axis=0).T)                                 # (8, 1)

    return (w1t, b1t, w2t, b2t, w3t, b3t)


@functools.partial(jax.jit, static_argnames=("tile_n",))
def gpt_forward(x, fused, tile_n=256):
    """x: (N, d_in) f32, fused: output of fuse_params -> (rho, p, u), each (N, 1)."""
    w1t, b1t, w2t, b2t, w3t, b3t = fused
    n, d_in = x.shape
    n_pad = ((n + tile_n - 1) // tile_n) * tile_n
    x_t = jnp.pad(x.T, ((0, 0), (0, n_pad - n)))                # (d_in, n_pad)

    full = lambda a: pl.BlockSpec(a.shape, lambda i: (0,) * a.ndim)

    out = pl.pallas_call(
        gpt_kernel,
        out_shape=jax.ShapeDtypeStruct((OUT_PAD, n_pad), jnp.float32),
        grid_spec=pltpu.PrefetchScalarGridSpec(
            num_scalar_prefetch=0,
            grid=(n_pad // tile_n,),
            in_specs=[
                pl.BlockSpec((d_in, tile_n), lambda i: (0, i)),  # x tile (lane = N)
                full(w1t), full(b1t),
                full(w2t), full(b2t),
                full(w3t), full(b3t),
            ],
            out_specs=pl.BlockSpec((OUT_PAD, tile_n), lambda i: (0, i)),
        ),
        compiler_params=pltpu.CompilerParams(
            dimension_semantics=("parallel",)),
    )(x_t, w1t, b1t, w2t, b2t, w3t, b3t)

    rho = out[0, :n][:, None]
    p = out[1, :n][:, None]
    u = out[2, :n][:, None]
    return rho, p, u


def gpt_forward_ref(x, params):
    """Pure-JAX reference mirroring the PyTorch forward (cat + bias-free Linear)."""
    (w_shift, b_shift, w1, b1, w2, b2, w3, b3, c_rho, c_p, c_u) = params
    n_nets = w_shift.shape[0]
    u_rho, u_p, u_u = [], [], []
    for i in range(n_nets):
        shift = x @ w_shift[i].T + b_shift[i]
        h = jnp.tanh(shift @ w1[i] + b1[i])
        h = jnp.tanh(h @ w2[i] + b2[i])
        o = h @ w3[i] + b3[i]
        u_rho.append(o[:, 0:1])
        u_p.append(o[:, 1:2])
        u_u.append(o[:, 2:3])
    u_rho = jnp.concatenate(u_rho, axis=1)
    u_p = jnp.concatenate(u_p, axis=1)
    u_u = jnp.concatenate(u_u, axis=1)
    return u_rho @ c_rho.T, u_p @ c_p.T, u_u @ c_u.T


def make_params(key, n_nets, d_in, hidden):
    ks = jax.random.split(key, 8)
    # Shift layers: initialized exactly as in GPT.__init__ (identity weight, zero bias).
    w_shift = jnp.broadcast_to(jnp.eye(d_in, dtype=jnp.float32), (n_nets, d_in, d_in))
    b_shift = jnp.zeros((n_nets, 1, d_in), jnp.float32)
    # Pretrained activation networks P_i (synthetic deterministic weights).
    # TODO(synk): the real P_i are external checkpoints; synthetic tanh MLPs stand in.
    w1 = 0.5 * jax.random.normal(ks[0], (n_nets, d_in, hidden), jnp.float32)
    b1 = 0.1 * jax.random.normal(ks[1], (n_nets, 1, hidden), jnp.float32)
    w2 = 0.5 * jax.random.normal(ks[2], (n_nets, hidden, hidden), jnp.float32)
    b2 = 0.1 * jax.random.normal(ks[3], (n_nets, 1, hidden), jnp.float32)
    w3 = 0.5 * jax.random.normal(ks[4], (n_nets, hidden, 3), jnp.float32)
    b3 = 0.1 * jax.random.normal(ks[5], (n_nets, 1, 3), jnp.float32)
    # c_initial, shared by the three frozen output heads (shape (1, n_nets)).
    c_initial = jax.random.normal(ks[6], (1, n_nets), jnp.float32)
    return (w_shift, b_shift, w1, b1, w2, b2, w3, b3,
            c_initial, c_initial, c_initial)


if __name__ == "__main__":
    key = jax.random.PRNGKey(0)
    k_x, k_p = jax.random.split(key)

    n_points = 200        # collocation points (x, t)
    d_in = 2              # layers[0]
    n_nets = 3            # layers[1] == layers[-2]
    hidden = 32           # hidden width of the synthetic pretrained PINNs

    x = jax.random.uniform(k_x, (n_points, d_in), jnp.float32, minval=-1.0, maxval=1.0)
    params = make_params(k_p, n_nets, d_in, hidden)

    fused = fuse_params(params)          # one-time static weight fold (outside jit)

    rho, p, u = gpt_forward(x, fused)
    jax.block_until_ready((rho, p, u))

    rho_r, p_r, u_r = gpt_forward_ref(x, params)
    np.testing.assert_allclose(np.asarray(rho), np.asarray(rho_r), rtol=1e-4, atol=2e-5)
    np.testing.assert_allclose(np.asarray(p), np.asarray(p_r), rtol=1e-4, atol=2e-5)
    np.testing.assert_allclose(np.asarray(u), np.asarray(u_r), rtol=1e-4, atol=2e-5)

    print("KERNEL_OK")
</pallas_src>

<mosaic_0001>
module attributes {stable_mosaic.version = 11 : i64} {
  func.func @gpt_kernel(%arg0: i32, %arg1: memref<2x256xf32, #tpu.memory_space<vmem>>, %arg2: memref<128x2xf32, #tpu.memory_space<vmem>>, %arg3: memref<128x1xf32, #tpu.memory_space<vmem>>, %arg4: memref<128x128xf32, #tpu.memory_space<vmem>>, %arg5: memref<128x1xf32, #tpu.memory_space<vmem>>, %arg6: memref<8x128xf32, #tpu.memory_space<vmem>>, %arg7: memref<8x1xf32, #tpu.memory_space<vmem>>, %arg8: memref<8x256xf32, #tpu.memory_space<vmem>>) attributes {dimension_semantics = [#tpu.dimension_semantics<parallel>], iteration_bounds = array<i64: 1>, scalar_prefetch = 0 : i64, scratch_operands = 0 : i64, tpu.core_type = #tpu.core_type<tc>, window_params = [{transform_indices = @transform_0, window_bounds = array<i64: 2, 256>}, {pipeline_mode = #tpu.pipeline_mode<synchronous>, transform_indices = @transform_1, window_bounds = array<i64: 128, 2>}, {pipeline_mode = #tpu.pipeline_mode<synchronous>, transform_indices = @transform_2, window_bounds = array<i64: 128, 1>}, {pipeline_mode = #tpu.pipeline_mode<synchronous>, transform_indices = @transform_3, window_bounds = array<i64: 128, 128>}, {pipeline_mode = #tpu.pipeline_mode<synchronous>, transform_indices = @transform_4, window_bounds = array<i64: 128, 1>}, {pipeline_mode = #tpu.pipeline_mode<synchronous>, transform_indices = @transform_5, window_bounds = array<i64: 8, 128>}, {pipeline_mode = #tpu.pipeline_mode<synchronous>, transform_indices = @transform_6, window_bounds = array<i64: 8, 1>}, {transform_indices = @transform_7, window_bounds = array<i64: 8, 256>}]} {
    %c0 = arith.constant 0 : index
    %c0_0 = arith.constant 0 : index
    %0 = vector.load %arg1[%c0, %c0_0] : memref<2x256xf32, #tpu.memory_space<vmem>>, vector<2x256xf32>
    %c0_1 = arith.constant 0 : index
    %c0_2 = arith.constant 0 : index
    %1 = vector.load %arg2[%c0_1, %c0_2] : memref<128x2xf32, #tpu.memory_space<vmem>>, vector<128x2xf32>
    %cst = arith.constant dense<0.000000e+00> : vector<128x256xf32>
    %2 = tpu.matmul %1, %0, %cst {dimension_numbers = #tpu.dot_dimension_numbers<[1], [0], [0], [1], [0, 0, 1, 1], [], []>} : vector<128x2xf32>, vector<2x256xf32>, vector<128x256xf32> -> vector<128x256xf32>
    %c0_3 = arith.constant 0 : index
    %c0_4 = arith.constant 0 : index
    %3 = vector.load %arg3[%c0_3, %c0_4] : memref<128x1xf32, #tpu.memory_space<vmem>>, vector<128x1xf32>
    %4 = vector.broadcast %3 : vector<128x1xf32> to vector<128x256xf32>
    %5 = arith.addf %2, %4 : vector<128x256xf32>
    %6 = math.tanh %5 : vector<128x256xf32>
    %c0_5 = arith.constant 0 : index
    %c0_6 = arith.constant 0 : index
    %7 = vector.load %arg4[%c0_5, %c0_6] : memref<128x128xf32, #tpu.memory_space<vmem>>, vector<128x128xf32>
    %cst_7 = arith.constant dense<0.000000e+00> : vector<128x256xf32>
    %8 = tpu.matmul %7, %6, %cst_7 {dimension_numbers = #tpu.dot_dimension_numbers<[1], [0], [0], [1], [0, 0, 1, 1], [], []>} : vector<128x128xf32>, vector<128x256xf32>, vector<128x256xf32> -> vector<128x256xf32>
    %c0_8 = arith.constant 0 : index
    %c0_9 = arith.constant 0 : index
    %9 = vector.load %arg5[%c0_8, %c0_9] : memref<128x1xf32, #tpu.memory_space<vmem>>, vector<128x1xf32>
    %10 = vector.broadcast %9 : vector<128x1xf32> to vector<128x256xf32>
    %11 = arith.addf %8, %10 : vector<128x256xf32>
    %12 = math.tanh %11 : vector<128x256xf32>
    %c0_10 = arith.constant 0 : index
    %c0_11 = arith.constant 0 : index
    %13 = vector.load %arg6[%c0_10, %c0_11] : memref<8x128xf32, #tpu.memory_space<vmem>>, vector<8x128xf32>
    %cst_12 = arith.constant dense<0.000000e+00> : vector<8x256xf32>
    %14 = tpu.matmul %13, %12, %cst_12 {dimension_numbers = #tpu.dot_dimension_numbers<[1], [0], [0], [1], [0, 0, 1, 1], [], []>} : vector<8x128xf32>, vector<128x256xf32>, vector<8x256xf32> -> vector<8x256xf32>
    %c0_13 = arith.constant 0 : index
    %c0_14 = arith.constant 0 : index
    %15 = vector.load %arg7[%c0_13, %c0_14] : memref<8x1xf32, #tpu.memory_space<vmem>>, vector<8x1xf32>
    %16 = vector.broadcast %15 : vector<8x1xf32> to vector<8x256xf32>
    %17 = arith.addf %14, %16 : vector<8x256xf32>
    %c0_15 = arith.constant 0 : index
    %c0_16 = arith.constant 0 : index
    %18 = vector.load %arg8[%c0_15, %c0_16] : memref<8x256xf32, #tpu.memory_space<vmem>>, vector<8x256xf32>
    tpu.vector_store %arg8[%c0_15, %c0_16], %17 {strides = array<i32>} : memref<8x256xf32, #tpu.memory_space<vmem>>, vector<8x256xf32>,
    return
  }
  func.func @transform_0(%arg0: i32) -> (i32, i32) {
    %c0_i32 = arith.constant 0 : i32
    %c0_i32_0 = arith.constant 0 : i32
    return %c0_i32, %arg0 : i32, i32
  }
  func.func @transform_1(%arg0: i32) -> (i32, i32) {
    %c0_i32 = arith.constant 0 : i32
    %c0_i32_0 = arith.constant 0 : i32
    %c0_i32_1 = arith.constant 0 : i32
    return %c0_i32, %c0_i32_0 : i32, i32
  }
  func.func @transform_2(%arg0: i32) -> (i32, i32) {
    %c0_i32 = arith.constant 0 : i32
    %c0_i32_0 = arith.constant 0 : i32
    %c0_i32_1 = arith.constant 0 : i32
    return %c0_i32, %c0_i32_0 : i32, i32
  }
  func.func @transform_3(%arg0: i32) -> (i32, i32) {
    %c0_i32 = arith.constant 0 : i32
    %c0_i32_0 = arith.constant 0 : i32
    %c0_i32_1 = arith.constant 0 : i32
    return %c0_i32, %c0_i32_0 : i32, i32
  }
  func.func @transform_4(%arg0: i32) -> (i32, i32) {
    %c0_i32 = arith.constant 0 : i32
    %c0_i32_0 = arith.constant 0 : i32
    %c0_i32_1 = arith.constant 0 : i32
    return %c0_i32, %c0_i32_0 : i32, i32
  }
  func.func @transform_5(%arg0: i32) -> (i32, i32) {
    %c0_i32 = arith.constant 0 : i32
    %c0_i32_0 = arith.constant 0 : i32
    %c0_i32_1 = arith.constant 0 : i32
    return %c0_i32, %c0_i32_0 : i32, i32
  }
  func.func @transform_6(%arg0: i32) -> (i32, i32) {
    %c0_i32 = arith.constant 0 : i32
    %c0_i32_0 = arith.constant 0 : i32
    %c0_i32_1 = arith.constant 0 : i32
    return %c0_i32, %c0_i32_0 : i32, i32
  }
  func.func @transform_7(%arg0: i32) -> (i32, i32) {
    %c0_i32 = arith.constant 0 : i32
    %c0_i32_0 = arith.constant 0 : i32
    return %c0_i32, %arg0 : i32, i32
  }
}

</mosaic_0001>

<llo_original>
// kernel: gpt_forward.1
$region0: #{gpt_forward.1}
  #allocation0 [shape = 'u32[]', space=smem, size = 0x4, offset = 0x4, fixed_abs, tag = 'smem constant byte address 0x4 - core index']
  #allocation1 [shape = 'u32[72,128]{1,0:T(1,128)}', space=vmem, size = 0x9000, scoped, tag = 'internal scratch']
  %s0 = inlined_call_operand.vmem [shape: f32[2,256], index: 0, kind: input, shape index: {}]
  %s1 = inlined_call_operand.vmem [shape: f32[128,2], index: 1, kind: input, shape index: {}]
  %s2 = inlined_call_operand.vmem [shape: f32[128,1], index: 2, kind: input, shape index: {}]
  %s3 = inlined_call_operand.vmem [shape: f32[128,128], index: 3, kind: input, shape index: {}]
  %s4 = inlined_call_operand.vmem [shape: f32[128,1], index: 4, kind: input, shape index: {}]
  %s5 = inlined_call_operand.vmem [shape: f32[8,128], index: 5, kind: input, shape index: {}]
  %s6 = inlined_call_operand.vmem [shape: f32[8,1], index: 6, kind: input, shape index: {}]
  %s7 = inlined_call_operand.vmem [shape: f32[8,256], index: 7, kind: output, shape index: {}]
  %s8 = sld [smem:[#allocation0]]
  $region38: #{gpt_forward.1} parent=0
    _
  %s10 = ssub.s32 1, %s8
  %s11 = scalar_select 0, %s10, %s8
  // Predicated region
  $region2: #{gpt_forward.1} parent=0 // pred_check
    _
  $region3: #{gpt_forward.1} parent=0 // pred_check_branch
    %13 = sbr.rel (0) target = $region5
  $region4: #{gpt_forward.1} parent=0 // pred_region
    _
  $region5: #{gpt_forward.1} parent=0 // pred_fallthru
    _
  // Predicated region
  $region6: #{gpt_forward.1} parent=0 // pred_check
    _
  $region7: #{gpt_forward.1} parent=0 // pred_check_branch
    %15 = sbr.rel (0) target = $region9
  $region8: #{gpt_forward.1} parent=0 // pred_region
    _
  $region9: #{gpt_forward.1} parent=0 // pred_fallthru
    _
  // Predicated region
  $region10: #{gpt_forward.1} parent=0 // pred_check
    _
  $region11: #{gpt_forward.1} parent=0 // pred_check_branch
    %17 = sbr.rel (0) target = $region13
  $region12: #{gpt_forward.1} parent=0 // pred_region
    _
  $region13: #{gpt_forward.1} parent=0 // pred_fallthru
    _
  // Predicated region
  $region14: #{gpt_forward.1} parent=0 // pred_check
    _
  $region15: #{gpt_forward.1} parent=0 // pred_check_branch
    %19 = sbr.rel (0) target = $region17
  $region16: #{gpt_forward.1} parent=0 // pred_region
    _
  $region17: #{gpt_forward.1} parent=0 // pred_fallthru
    _
  // Predicated region
  $region18: #{gpt_forward.1} parent=0 // pred_check
    _
  $region19: #{gpt_forward.1} parent=0 // pred_check_branch
    %21 = sbr.rel (0) target = $region21
  $region20: #{gpt_forward.1} parent=0 // pred_region
    _
  $region21: #{gpt_forward.1} parent=0 // pred_fallthru
    _
  // Predicated region
  $region22: #{gpt_forward.1} parent=0 // pred_check
    _
  $region23: #{gpt_forward.1} parent=0 // pred_check_branch
    %23 = sbr.rel (0) target = $region25
  $region24: #{gpt_forward.1} parent=0 // pred_region
    _
  $region25: #{gpt_forward.1} parent=0 // pred_fallthru
    _
  // Predicated region
  $region26: #{gpt_forward.1} parent=0 // pred_check
    _
  $region27: #{gpt_forward.1} parent=0 // pred_check_branch
    %25 = sbr.rel (0) target = $region29
  $region28: #{gpt_forward.1} parent=0 // pred_region
    _
  $region29: #{gpt_forward.1} parent=0 // pred_fallthru
    _
  %v26 = vld [vmem:[%s0] sm:$0xf]
  %v27 = vld [vmem:[%s1] sm:$0xff]
  %v28 = vld [vmem:[%s1 + $0x8] sm:$0xff]
  %v29 = vld [vmem:[%s1 + $0x10] sm:$0xff]
  %v30 = vld [vmem:[%s1 + $0x18] sm:$0xff]
  %v31 = vld [vmem:[%s1 + $0x20] sm:$0xff]
  %v32 = vld [vmem:[%s1 + $0x28] sm:$0xff]
  %v33 = vld [vmem:[%s1 + $0x30] sm:$0xff]
  %v34 = vld [vmem:[%s1 + $0x38] sm:$0xff]
  %v35 = vld [vmem:[%s1 + $0x40] sm:$0xff]
  %v36 = vld [vmem:[%s1 + $0x48] sm:$0xff]
  %v37 = vld [vmem:[%s1 + $0x50] sm:$0xff]
  %v38 = vld [vmem:[%s1 + $0x58] sm:$0xff]
  %v39 = vld [vmem:[%s1 + $0x60] sm:$0xff]
  %v40 = vld [vmem:[%s1 + $0x68] sm:$0xff]
  %v41 = vld [vmem:[%s1 + $0x70] sm:$0xff]
  %v42 = vld [vmem:[%s1 + $0x78] sm:$0xff]
  %v43 = vld [vmem:[%s2] sm:$0xff]
  %v44 = vld [vmem:[%s2 + $0x8] sm:$0xff]
  %v45 = vld [vmem:[%s2 + $0x10] sm:$0xff]
  %v46 = vld [vmem:[%s2 + $0x18] sm:$0xff]
  %v47 = vld [vmem:[%s2 + $0x20] sm:$0xff]
  %v48 = vld [vmem:[%s2 + $0x28] sm:$0xff]
  %v49 = vld [vmem:[%s2 + $0x30] sm:$0xff]
  %v50 = vld [vmem:[%s2 + $0x38] sm:$0xff]
  %v51 = vld [vmem:[%s2 + $0x40] sm:$0xff]
  %v52 = vld [vmem:[%s2 + $0x48] sm:$0xff]
  %v53 = vld [vmem:[%s2 + $0x50] sm:$0xff]
  %v54 = vld [vmem:[%s2 + $0x58] sm:$0xff]
  %v55 = vld [vmem:[%s2 + $0x60] sm:$0xff]
  %v56 = vld [vmem:[%s2 + $0x68] sm:$0xff]
  %v57 = vld [vmem:[%s2 + $0x70] sm:$0xff]
  %v58 = vld [vmem:[%s2 + $0x78] sm:$0xff]
  %60 = vset.pattern.permute.xlu0 0
  %61 = vperm.xlu0 %60, %v43
  %v62 = vpop.permute.xlu0 %61
  %65 = vset.pattern.permute.xlu0 0
  %66 = vperm.xlu0 %65, %v44
  %v67 = vpop.permute.xlu0 %66
  %70 = vset.pattern.permute.xlu0 0
  %71 = vperm.xlu0 %70, %v45
  %v72 = vpop.permute.xlu0 %71
  %75 = vset.pattern.permute.xlu0 0
  %76 = vperm.xlu0 %75, %v46
  %v77 = vpop.permute.xlu0 %76
  %80 = vset.pattern.permute.xlu0 0
  %81 = vperm.xlu0 %80, %v47
  %v82 = vpop.permute.xlu0 %81
  %85 = vset.pattern.permute.xlu0 0
  %86 = vperm.xlu0 %85, %v48
  %v87 = vpop.permute.xlu0 %86
  %90 = vset.pattern.permute.xlu0 0
  %91 = vperm.xlu0 %90, %v49
  %v92 = vpop.permute.xlu0 %91
  %95 = vset.pattern.permute.xlu0 0
  %96 = vperm.xlu0 %95, %v50
  %v97 = vpop.permute.xlu0 %96
  %100 = vset.pattern.permute.xlu0 0
  %101 = vperm.xlu0 %100, %v51
  %v102 = vpop.permute.xlu0 %101
  %105 = vset.pattern.permute.xlu0 0
  %106 = vperm.xlu0 %105, %v52
  %v107 = vpop.permute.xlu0 %106
  %110 = vset.pattern.permute.xlu0 0
  %111 = vperm.xlu0 %110, %v53
  %v112 = vpop.permute.xlu0 %111
  %115 = vset.pattern.permute.xlu0 0
  %116 = vperm.xlu0 %115, %v54
  %v117 = vpop.permute.xlu0 %116
  %120 = vset.pattern.permute.xlu0 0
  %121 = vperm.xlu0 %120, %v55
  %v122 = vpop.permute.xlu0 %121
  %125 = vset.pattern.permute.xlu0 0
  %126 = vperm.xlu0 %125, %v56
  %v127 = vpop.permute.xlu0 %126
  %130 = vset.pattern.permute.xlu0 0
  %131 = vperm.xlu0 %130, %v57
  %v132 = vpop.permute.xlu0 %131
  %135 = vset.pattern.permute.xlu0 0
  %136 = vperm.xlu0 %135, %v58
  %v137 = vpop.permute.xlu0 %136
  %140 = vst [vmem:[#allocation1] ss:$4 sm:$0xff] %v26
  %v141 = vld.sshfl [vmem:[#allocation1] sm:$0xff pattern:$0x73625140]
  %v142 = vld.sshfl [vmem:[#allocation1 + $0x8] sm:$0xff pattern:$0x73625140]
  %vm143 = vcmask 15360
  %v145 = vsel %vm143, %v27, 0
  %v148 = vsel %vm143, %v28, 0
  %v151 = vsel %vm143, %v29, 0
  %v154 = vsel %vm143, %v30, 0
  %v157 = vsel %vm143, %v31, 0
  %v160 = vsel %vm143, %v32, 0
  %v163 = vsel %vm143, %v33, 0
  %v166 = vsel %vm143, %v34, 0
  %v169 = vsel %vm143, %v35, 0
  %v172 = vsel %vm143, %v36, 0
  %v175 = vsel %vm143, %v37, 0
  %v178 = vsel %vm143, %v38, 0
  %v181 = vsel %vm143, %v39, 0
  %v184 = vsel %vm143, %v40, 0
  %v187 = vsel %vm143, %v41, 0
  %v190 = vsel %vm143, %v42, 0
  %vm192 = vcmask 1041408
  %v193 = vsel %vm192, %v141, 0
  %v195 = vsel %vm192, %v142, 0
  %197 = vmatpush.msra.mxu0 0.0
  %198 = vmatpush.msra.mxu0 0.0
  %199 = vmatpush.msra.mxu0 0.0
  %200 = vmatpush.msra.mxu0 0.0
  %201 = vmatpush.msra.mxu0 0.0
  %202 = vmatpush.msra.mxu0 0.0
  %203 = vmatpush.msra.mxu0 0.0
  %204 = vmatpush.msra.mxu0 0.0
  %205 = vmatpush.msra.mxu0 0.0
  %206 = vmatpush.msra.mxu0 0.0
  %207 = vmatpush.msra.mxu0 0.0
  %208 = vmatpush.msra.mxu0 0.0
  %209 = vmatpush.msra.mxu0 0.0
  %210 = vmatpush.msra.mxu0 0.0
  %211 = vmatpush.msra.mxu0 0.0
  %212 = vmatpush.msra.mxu0 %v193
  %213 = vmatmul.f32.gmra.mxu0 %v145
  %v214 = vpop.f32.mrf.mxu0
  %v215 = vadd.f32 %v62, %v214
  %216 = vmatmul.f32.gmra.mxu0 %v148
  %v217 = vpop.f32.mrf.mxu0
  %v218 = vadd.f32 %v67, %v217
  %219 = vmatmul.f32.gmra.mxu0 %v151
  %v220 = vpop.f32.mrf.mxu0
  %v221 = vadd.f32 %v72, %v220
  %222 = vmatmul.f32.gmra.mxu0 %v154
  %v223 = vpop.f32.mrf.mxu0
  %v224 = vadd.f32 %v77, %v223
  %225 = vmatmul.f32.gmra.mxu0 %v157
  %v226 = vpop.f32.mrf.mxu0
  %v227 = vadd.f32 %v82, %v226
  %228 = vmatmul.f32.gmra.mxu0 %v160
  %v229 = vpop.f32.mrf.mxu0
  %v230 = vadd.f32 %v87, %v229
  %231 = vmatmul.f32.gmra.mxu0 %v163
  %v232 = vpop.f32.mrf.mxu0
  %v233 = vadd.f32 %v92, %v232
  %234 = vmatmul.f32.gmra.mxu0 %v166
  %v235 = vpop.f32.mrf.mxu0
  %v236 = vadd.f32 %v97, %v235
  %237 = vmatmul.f32.gmra.mxu0 %v169
  %v238 = vpop.f32.mrf.mxu0
  %v239 = vadd.f32 %v102, %v238
  %240 = vmatmul.f32.gmra.mxu0 %v172
  %v241 = vpop.f32.mrf.mxu0
  %v242 = vadd.f32 %v107, %v241
  %243 = vmatmul.f32.gmra.mxu0 %v175
  %v244 = vpop.f32.mrf.mxu0
  %v245 = vadd.f32 %v112, %v244
  %246 = vmatmul.f32.gmra.mxu0 %v178
  %v247 = vpop.f32.mrf.mxu0
  %v248 = vadd.f32 %v117, %v247
  %249 = vmatmul.f32.gmra.mxu0 %v181
  %v250 = vpop.f32.mrf.mxu0
  %v251 = vadd.f32 %v122, %v250
  %252 = vmatmul.f32.gmra.mxu0 %v184
  %v253 = vpop.f32.mrf.mxu0
  %v254 = vadd.f32 %v127, %v253
  %255 = vmatmul.f32.gmra.mxu0 %v187
  %v256 = vpop.f32.mrf.mxu0
  %v257 = vadd.f32 %v132, %v256
  %258 = vmatmul.f32.gmra.mxu0 %v190
  %v259 = vpop.f32.mrf.mxu0
  %v260 = vadd.f32 %v137, %v259
  %261 = vdwg.mxu0
  %262 = vmatpush.msra.mxu0 0.0
  %263 = vmatpush.msra.mxu0 0.0
  %264 = vmatpush.msra.mxu0 0.0
  %265 = vmatpush.msra.mxu0 0.0
  %266 = vmatpush.msra.mxu0 0.0
  %267 = vmatpush.msra.mxu0 0.0
  %268 = vmatpush.msra.mxu0 0.0
  %269 = vmatpush.msra.mxu0 0.0
  %270 = vmatpush.msra.mxu0 0.0
  %271 = vmatpush.msra.mxu0 0.0
  %272 = vmatpush.msra.mxu0 0.0
  %273 = vmatpush.msra.mxu0 0.0
  %274 = vmatpush.msra.mxu0 0.0
  %275 = vmatpush.msra.mxu0 0.0
  %276 = vmatpush.msra.mxu0 0.0
  %277 = vmatpush.msra.mxu0 %v195
  %278 = vmatmul.f32.gmra.mxu0 %v145
  %v279 = vpop.f32.mrf.mxu0
  %v280 = vadd.f32 %v62, %v279
  %281 = vmatmul.f32.gmra.mxu0 %v148
  %v282 = vpop.f32.mrf.mxu0
  %v283 = vadd.f32 %v67, %v282
  %284 = vmatmul.f32.gmra.mxu0 %v151
  %v285 = vpop.f32.mrf.mxu0
  %v286 = vadd.f32 %v72, %v285
  %287 = vmatmul.f32.gmra.mxu0 %v154
  %v288 = vpop.f32.mrf.mxu0
  %v289 = vadd.f32 %v77, %v288
  %290 = vmatmul.f32.gmra.mxu0 %v157
  %v291 = vpop.f32.mrf.mxu0
  %v292 = vadd.f32 %v82, %v291
  %293 = vmatmul.f32.gmra.mxu0 %v160
  %v294 = vpop.f32.mrf.mxu0
  %v295 = vadd.f32 %v87, %v294
  %296 = vmatmul.f32.gmra.mxu0 %v163
  %v297 = vpop.f32.mrf.mxu0
  %v298 = vadd.f32 %v92, %v297
  %299 = vmatmul.f32.gmra.mxu0 %v166
  %v300 = vpop.f32.mrf.mxu0
  %v301 = vadd.f32 %v97, %v300
  %302 = vmatmul.f32.gmra.mxu0 %v169
  %v303 = vpop.f32.mrf.mxu0
  %v304 = vadd.f32 %v102, %v303
  %305 = vmatmul.f32.gmra.mxu0 %v172
  %v306 = vpop.f32.mrf.mxu0
  %v307 = vadd.f32 %v107, %v306
  %308 = vmatmul.f32.gmra.mxu0 %v175
  %v309 = vpop.f32.mrf.mxu0
  %v310 = vadd.f32 %v112, %v309
  %311 = vmatmul.f32.gmra.mxu0 %v178
  %v312 = vpop.f32.mrf.mxu0
  %v313 = vadd.f32 %v117, %v312
  %314 = vmatmul.f32.gmra.mxu0 %v181
  %v315 = vpop.f32.mrf.mxu0
  %v316 = vadd.f32 %v122, %v315
  %317 = vmatmul.f32.gmra.mxu0 %v184
  %v318 = vpop.f32.mrf.mxu0
  %v319 = vadd.f32 %v127, %v318
  %320 = vmatmul.f32.gmra.mxu0 %v187
  %v321 = vpop.f32.mrf.mxu0
  %v322 = vadd.f32 %v132, %v321
  %323 = vmatmul.f32.gmra.mxu0 %v190
  %v324 = vpop.f32.mrf.mxu0
  %v325 = vadd.f32 %v137, %v324
  %326 = vdwg.mxu0
  %v327 = vtanh.pop %v215
  %v328 = vtanh.pop %v280
  %v329 = vtanh.pop %v218
  %v330 = vtanh.pop %v283
  %v331 = vtanh.pop %v221
  %v332 = vtanh.pop %v286
  %v333 = vtanh.pop %v224
  %v334 = vtanh.pop %v289
  %v335 = vtanh.pop %v227
  %v336 = vtanh.pop %v292
  %v337 = vtanh.pop %v230
  %v338 = vtanh.pop %v295
  %v339 = vtanh.pop %v233
  %v340 = vtanh.pop %v298
  %v341 = vtanh.pop %v236
  %v342 = vtanh.pop %v301
  %v343 = vtanh.pop %v239
  %v344 = vtanh.pop %v304
  %v345 = vtanh.pop %v242
  %v346 = vtanh.pop %v307
  %v347 = vtanh.pop %v245
  %v348 = vtanh.pop %v310
  %v349 = vtanh.pop %v248
  %v350 = vtanh.pop %v313
  %v351 = vtanh.pop %v251
  %v352 = vtanh.pop %v316
  %v353 = vtanh.pop %v254
  %v354 = vtanh.pop %v319
  %v355 = vtanh.pop %v257
  %v356 = vtanh.pop %v322
  %v357 = vtanh.pop %v260
  %v358 = vtanh.pop %v325
  %v359 = vld [vmem:[%s3] sm:$0xff]
  %v360 = vld [vmem:[%s3 + $0x8] sm:$0xff]
  %v361 = vld [vmem:[%s3 + $0x10] sm:$0xff]
  %v362 = vld [vmem:[%s3 + $0x18] sm:$0xff]
  %v363 = vld [vmem:[%s3 + $0x20] sm:$0xff]
  %v364 = vld [vmem:[%s3 + $0x28] sm:$0xff]
  %v365 = vld [vmem:[%s3 + $0x30] sm:$0xff]
  %v366 = vld [vmem:[%s3 + $0x38] sm:$0xff]
  %v367 = vld [vmem:[%s3 + $0x40] sm:$0xff]
  %v368 = vld [vmem:[%s3 + $0x48] sm:$0xff]
  %v369 = vld [vmem:[%s3 + $0x50] sm:$0xff]
  %v370 = vld [vmem:[%s3 + $0x58] sm:$0xff]
  %v371 = vld [vmem:[%s3 + $0x60] sm:$0xff]
  %v372 = vld [vmem:[%s3 + $0x68] sm:$0xff]
  %v373 = vld [vmem:[%s3 + $0x70] sm:$0xff]
  %v374 = vld [vmem:[%s3 + $0x78] sm:$0xff]
  %v375 = vld [vmem:[%s4] sm:$0xff]
  %v376 = vld [vmem:[%s4 + $0x8] sm:$0xff]
  %v377 = vld [vmem:[%s4 + $0x10] sm:$0xff]
  %v378 = vld [vmem:[%s4 + $0x18] sm:$0xff]
  %v379 = vld [vmem:[%s4 + $0x20] sm:$0xff]
  %v380 = vld [vmem:[%s4 + $0x28] sm:$0xff]
  %v381 = vld [vmem:[%s4 + $0x30] sm:$0xff]
  %v382 = vld [vmem:[%s4 + $0x38] sm:$0xff]
  %v383 = vld [vmem:[%s4 + $0x40] sm:$0xff]
  %v384 = vld [vmem:[%s4 + $0x48] sm:$0xff]
  %v385 = vld [vmem:[%s4 + $0x50] sm:$0xff]
  %v386 = vld [vmem:[%s4 + $0x58] sm:$0xff]
  %v387 = vld [vmem:[%s4 + $0x60] sm:$0xff]
  %v388 = vld [vmem:[%s4 + $0x68] sm:$0xff]
  %v389 = vld [vmem:[%s4 + $0x70] sm:$0xff]
  %v390 = vld [vmem:[%s4 + $0x78] sm:$0xff]
  %392 = vset.pattern.permute.xlu0 0
  %393 = vperm.xlu0 %392, %v375
  %v394 = vpop.permute.xlu0 %393
  %397 = vset.pattern.permute.xlu0 0
  %398 = vperm.xlu0 %397, %v376
  %v399 = vpop.permute.xlu0 %398
  %402 = vset.pattern.permute.xlu0 0
  %403 = vperm.xlu0 %402, %v377
  %v404 = vpop.permute.xlu0 %403
  %407 = vset.pattern.permute.xlu0 0
  %408 = vperm.xlu0 %407, %v378
  %v409 = vpop.permute.xlu0 %408
  %412 = vset.pattern.permute.xlu0 0
  %413 = vperm.xlu0 %412, %v379
  %v414 = vpop.permute.xlu0 %413
  %417 = vset.pattern.permute.xlu0 0
  %418 = vperm.xlu0 %417, %v380
  %v419 = vpop.permute.xlu0 %418
  %422 = vset.pattern.permute.xlu0 0
  %423 = vperm.xlu0 %422, %v381
  %v424 = vpop.permute.xlu0 %423
  %427 = vset.pattern.permute.xlu0 0
  %428 = vperm.xlu0 %427, %v382
  %v429 = vpop.permute.xlu0 %428
  %432 = vset.pattern.permute.xlu0 0
  %433 = vperm.xlu0 %432, %v383
  %v434 = vpop.permute.xlu0 %433
  %437 = vset.pattern.permute.xlu0 0
  %438 = vperm.xlu0 %437, %v384
  %v439 = vpop.permute.xlu0 %438
  %442 = vset.pattern.permute.xlu0 0
  %443 = vperm.xlu0 %442, %v385
  %v444 = vpop.permute.xlu0 %443
  %447 = vset.pattern.permute.xlu0 0
  %448 = vperm.xlu0 %447, %v386
  %v449 = vpop.permute.xlu0 %448
  %452 = vset.pattern.permute.xlu0 0
  %453 = vperm.xlu0 %452, %v387
  %v454 = vpop.permute.xlu0 %453
  %457 = vset.pattern.permute.xlu0 0
  %458 = vperm.xlu0 %457, %v388
  %v459 = vpop.permute.xlu0 %458
  %462 = vset.pattern.permute.xlu0 0
  %463 = vperm.xlu0 %462, %v389
  %v464 = vpop.permute.xlu0 %463
  %467 = vset.pattern.permute.xlu0 0
  %468 = vperm.xlu0 %467, %v390
  %v469 = vpop.permute.xlu0 %468
  %471 = vmatpush.msra.mxu0 %v357
  %472 = vmatpush.msra.mxu0 %v355
  %473 = vmatpush.msra.mxu0 %v353
  %474 = vmatpush.msra.mxu0 %v351
  %475 = vmatpush.msra.mxu0 %v349
  %476 = vmatpush.msra.mxu0 %v347
  %477 = vmatpush.msra.mxu0 %v345
  %478 = vmatpush.msra.mxu0 %v343
  %479 = vmatpush.msra.mxu0 %v341
  %480 = vmatpush.msra.mxu0 %v339
  %481 = vmatpush.msra.mxu0 %v337
  %482 = vmatpush.msra.mxu0 %v335
  %483 = vmatpush.msra.mxu0 %v333
  %484 = vmatpush.msra.mxu0 %v331
  %485 = vmatpush.msra.mxu0 %v329
  %486 = vmatpush.msra.mxu0 %v327
  %487 = vmatmul.f32.gmra.mxu0 %v359
  %v488 = vpop.f32.mrf.mxu0
  %v489 = vadd.f32 %v394, %v488
  %490 = vmatmul.f32.gmra.mxu0 %v360
  %v491 = vpop.f32.mrf.mxu0
  %v492 = vadd.f32 %v399, %v491
  %493 = vmatmul.f32.gmra.mxu0 %v361
  %v494 = vpop.f32.mrf.mxu0
  %v495 = vadd.f32 %v404, %v494
  %496 = vmatmul.f32.gmra.mxu0 %v362
  %v497 = vpop.f32.mrf.mxu0
  %v498 = vadd.f32 %v409, %v497
  %499 = vmatmul.f32.gmra.mxu0 %v363
  %v500 = vpop.f32.mrf.mxu0
  %v501 = vadd.f32 %v414, %v500
  %502 = vmatmul.f32.gmra.mxu0 %v364
  %v503 = vpop.f32.mrf.mxu0
  %v504 = vadd.f32 %v419, %v503
  %505 = vmatmul.f32.gmra.mxu0 %v365
  %v506 = vpop.f32.mrf.mxu0
  %v507 = vadd.f32 %v424, %v506
  %508 = vmatmul.f32.gmra.mxu0 %v366
  %v509 = vpop.f32.mrf.mxu0
  %v510 = vadd.f32 %v429, %v509
  %511 = vmatmul.f32.gmra.mxu0 %v367
  %v512 = vpop.f32.mrf.mxu0
  %v513 = vadd.f32 %v434, %v512
  %514 = vmatmul.f32.gmra.mxu0 %v368
  %v515 = vpop.f32.mrf.mxu0
  %v516 = vadd.f32 %v439, %v515
  %517 = vmatmul.f32.gmra.mxu0 %v369
  %v518 = vpop.f32.mrf.mxu0
  %v519 = vadd.f32 %v444, %v518
  %520 = vmatmul.f32.gmra.mxu0 %v370
  %v521 = vpop.f32.mrf.mxu0
  %v522 = vadd.f32 %v449, %v521
  %523 = vmatmul.f32.gmra.mxu0 %v371
  %v524 = vpop.f32.mrf.mxu0
  %v525 = vadd.f32 %v454, %v524
  %526 = vmatmul.f32.gmra.mxu0 %v372
  %v527 = vpop.f32.mrf.mxu0
  %v528 = vadd.f32 %v459, %v527
  %529 = vmatmul.f32.gmra.mxu0 %v373
  %v530 = vpop.f32.mrf.mxu0
  %v531 = vadd.f32 %v464, %v530
  %532 = vmatmul.f32.gmra.mxu0 %v374
  %v533 = vpop.f32.mrf.mxu0
  %v534 = vadd.f32 %v469, %v533
  %535 = vdwg.mxu0
  %536 = vmatpush.msra.mxu0 %v358
  %537 = vmatpush.msra.mxu0 %v356
  %538 = vmatpush.msra.mxu0 %v354
  %539 = vmatpush.msra.mxu0 %v352
  %540 = vmatpush.msra.mxu0 %v350
  %541 = vmatpush.msra.mxu0 %v348
  %542 = vmatpush.msra.mxu0 %v346
  %543 = vmatpush.msra.mxu0 %v344
  %544 = vmatpush.msra.mxu0 %v342
  %545 = vmatpush.msra.mxu0 %v340
  %546 = vmatpush.msra.mxu0 %v338
  %547 = vmatpush.msra.mxu0 %v336
  %548 = vmatpush.msra.mxu0 %v334
  %549 = vmatpush.msra.mxu0 %v332
  %550 = vmatpush.msra.mxu0 %v330
  %551 = vmatpush.msra.mxu0 %v328
  %552 = vmatmul.f32.gmra.mxu0 %v359
  %v553 = vpop.f32.mrf.mxu0
  %v554 = vadd.f32 %v394, %v553
  %555 = vmatmul.f32.gmra.mxu0 %v360
  %v556 = vpop.f32.mrf.mxu0
  %v557 = vadd.f32 %v399, %v556
  %558 = vmatmul.f32.gmra.mxu0 %v361
  %v559 = vpop.f32.mrf.mxu0
  %v560 = vadd.f32 %v404, %v559
  %561 = vmatmul.f32.gmra.mxu0 %v362
  %v562 = vpop.f32.mrf.mxu0
  %v563 = vadd.f32 %v409, %v562
  %564 = vmatmul.f32.gmra.mxu0 %v363
  %v565 = vpop.f32.mrf.mxu0
  %v566 = vadd.f32 %v414, %v565
  %567 = vmatmul.f32.gmra.mxu0 %v364
  %v568 = vpop.f32.mrf.mxu0
  %v569 = vadd.f32 %v419, %v568
  %570 = vmatmul.f32.gmra.mxu0 %v365
  %v571 = vpop.f32.mrf.mxu0
  %v572 = vadd.f32 %v424, %v571
  %573 = vmatmul.f32.gmra.mxu0 %v366
  %v574 = vpop.f32.mrf.mxu0
  %v575 = vadd.f32 %v429, %v574
  %576 = vmatmul.f32.gmra.mxu0 %v367
  %v577 = vpop.f32.mrf.mxu0
  %v578 = vadd.f32 %v434, %v577
  %579 = vmatmul.f32.gmra.mxu0 %v368
  %v580 = vpop.f32.mrf.mxu0
  %v581 = vadd.f32 %v439, %v580
  %582 = vmatmul.f32.gmra.mxu0 %v369
  %v583 = vpop.f32.mrf.mxu0
  %v584 = vadd.f32 %v444, %v583
  %585 = vmatmul.f32.gmra.mxu0 %v370
  %v586 = vpop.f32.mrf.mxu0
  %v587 = vadd.f32 %v449, %v586
  %588 = vmatmul.f32.gmra.mxu0 %v371
  %v589 = vpop.f32.mrf.mxu0
  %v590 = vadd.f32 %v454, %v589
  %591 = vmatmul.f32.gmra.mxu0 %v372
  %v592 = vpop.f32.mrf.mxu0
  %v593 = vadd.f32 %v459, %v592
  %594 = vmatmul.f32.gmra.mxu0 %v373
  %v595 = vpop.f32.mrf.mxu0
  %v596 = vadd.f32 %v464, %v595
  %597 = vmatmul.f32.gmra.mxu0 %v374
  %v598 = vpop.f32.mrf.mxu0
  %v599 = vadd.f32 %v469, %v598
  %600 = vdwg.mxu0
  %v601 = vtanh.pop %v489
  %v602 = vtanh.pop %v554
  %v603 = vtanh.pop %v492
  %v604 = vtanh.pop %v557
  %v605 = vtanh.pop %v495
  %v606 = vtanh.pop %v560
  %v607 = vtanh.pop %v498
  %v608 = vtanh.pop %v563
  %v609 = vtanh.pop %v501
  %v610 = vtanh.pop %v566
  %v611 = vtanh.pop %v504
  %v612 = vtanh.pop %v569
  %v613 = vtanh.pop %v507
  %v614 = vtanh.pop %v572
  %v615 = vtanh.pop %v510
  %v616 = vtanh.pop %v575
  %v617 = vtanh.pop %v513
  %v618 = vtanh.pop %v578
  %v619 = vtanh.pop %v516
  %v620 = vtanh.pop %v581
  %v621 = vtanh.pop %v519
  %v622 = vtanh.pop %v584
  %v623 = vtanh.pop %v522
  %v624 = vtanh.pop %v587
  %v625 = vtanh.pop %v525
  %v626 = vtanh.pop %v590
  %v627 = vtanh.pop %v528
  %v628 = vtanh.pop %v593
  %v629 = vtanh.pop %v531
  %v630 = vtanh.pop %v596
  %v631 = vtanh.pop %v534
  %v632 = vtanh.pop %v599
  %v633 = vld [vmem:[%s5] sm:$0xff]
  %v634 = vld [vmem:[%s6] sm:$0xff]
  %636 = vset.pattern.permute.xlu0 0
  %637 = vperm.xlu0 %636, %v634
  %v638 = vpop.permute.xlu0 %637
  %640 = vmatpush.msra.mxu0 %v631
  %641 = vmatpush.msra.mxu0 %v629
  %642 = vmatpush.msra.mxu0 %v627
  %643 = vmatpush.msra.mxu0 %v625
  %644 = vmatpush.msra.mxu0 %v623
  %645 = vmatpush.msra.mxu0 %v621
  %646 = vmatpush.msra.mxu0 %v619
  %647 = vmatpush.msra.mxu0 %v617
  %648 = vmatpush.msra.mxu0 %v615
  %649 = vmatpush.msra.mxu0 %v613
  %650 = vmatpush.msra.mxu0 %v611
  %651 = vmatpush.msra.mxu0 %v609
  %652 = vmatpush.msra.mxu0 %v607
  %653 = vmatpush.msra.mxu0 %v605
  %654 = vmatpush.msra.mxu0 %v603
  %655 = vmatpush.msra.mxu0 %v601
  %656 = vmatmul.f32.gmra.mxu0 %v633
  %v657 = vpop.f32.mrf.mxu0
  %v658 = vadd.f32 %v638, %v657
  %659 = vdwg.mxu0
  %660 = vmatpush.msra.mxu0 %v632
  %661 = vmatpush.msra.mxu0 %v630
  %662 = vmatpush.msra.mxu0 %v628
  %663 = vmatpush.msra.mxu0 %v626
  %664 = vmatpush.msra.mxu0 %v624
  %665 = vmatpush.msra.mxu0 %v622
  %666 = vmatpush.msra.mxu0 %v620
  %667 = vmatpush.msra.mxu0 %v618
  %668 = vmatpush.msra.mxu0 %v616
  %669 = vmatpush.msra.mxu0 %v614
  %670 = vmatpush.msra.mxu0 %v612
  %671 = vmatpush.msra.mxu0 %v610
  %672 = vmatpush.msra.mxu0 %v608
  %673 = vmatpush.msra.mxu0 %v606
  %674 = vmatpush.msra.mxu0 %v604
  %675 = vmatpush.msra.mxu0 %v602
  %676 = vmatmul.f32.gmra.mxu0 %v633
  %v677 = vpop.f32.mrf.mxu0
  %v678 = vadd.f32 %v638, %v677
  %679 = vdwg.mxu0
  %680 = vst [vmem:[%s7] sm:$0xff] %v658
  %681 = vst [vmem:[%s7 + $0x8] sm:$0xff] %v678
  // Predicated region
  $region30: #{gpt_forward.1} parent=0 // pred_check
    _
  $region31: #{gpt_forward.1} parent=0 // pred_check_branch
    %683 = sbr.rel (0) target = $region33
  $region32: #{gpt_forward.1} parent=0 // pred_region
    _
  $region33: #{gpt_forward.1} parent=0 // pred_fallthru
    _
  // Predicated region
  $region34: #{gpt_forward.1} parent=0 // pred_check
    _
  $region35: #{gpt_forward.1} parent=0 // pred_check_branch
    %685 = sbr.rel (0) target = $region37
  $region36: #{gpt_forward.1} parent=0 // pred_region
    _
  $region37: #{gpt_forward.1} parent=0 // pred_fallthru
    _

</llo_original>
